<compile_context>
chip_gen: v7x
topology: tpu7x:2x2x1
jax: 0.10.0
libtpu: 0.0.40
codegen_flags: <defaults>
</compile_context>

<pallas_src>
import math
from functools import partial

import numpy as np
import jax
import jax.numpy as jnp
from jax.experimental import pallas as pl
from jax.experimental.pallas import tpu as pltpu


# ------------------------------- tiling constants -------------------------------
TM_CAP = 512        # matmul row tile cap (multiple of 16 for bf16 packing)
TN_CAP = 512        # matmul output-column tile cap (multiple of 128)
TK_CAP = 512        # matmul reduction tile cap (multiple of 128)
TR_LN_CAP = 512     # layernorm row tile cap
TR_FUSED_CAP = 256  # fused FFN / o-proj row tile cap
LT_CONV_CAP = 256   # conv kernels: output-row tile cap
GB_ATTN_CAP = 8     # attention (batch*heads) block cap
TQ_ATTN_CAP = 128   # attention query-row tile cap
TKV_ATTN_CAP = 256  # attention key-row tile cap
VMEM_LIMIT = 32 * 1024 * 1024


def _round_up(x, m):
    return ((x + m - 1) // m) * m


def _cdiv(a, b):
    return -(-a // b)


def _pick_tile(dim, cap, mult):
    """Largest tile <= cap, multiple of `mult`, preferring exact divisors of dim."""
    if dim <= cap:
        return dim
    t = (cap // mult) * mult
    best = t
    while t >= mult:
        if dim % t == 0:
            return t
        t -= mult
    return best


def _pad2(x, rows, cols, dtype):
    x = x.astype(dtype)
    r, c = x.shape
    if r == rows and c == cols:
        return x
    return jnp.pad(x, ((0, rows - r), (0, cols - c)))


def _gelu(x):
    # TODO(synk): tanh approximation of GELU (nn.GELU exact-erf differs at ~1e-3)
    c = math.sqrt(2.0 / math.pi)
    return 0.5 * x * (1.0 + jnp.tanh(c * (x + 0.044715 * x * x * x)))


# ----------------------------- tiled matmul + bias + activation -----------------------------

def _mm_kernel(a_ref, b_ref, bias_ref, o_ref, acc_ref, *, act):
    @pl.when(pl.program_id(2) == 0)
    def _():
        acc_ref[...] = jnp.zeros_like(acc_ref)

    acc_ref[...] += jnp.dot(a_ref[...], b_ref[...], preferred_element_type=jnp.float32)

    @pl.when(pl.program_id(2) == pl.num_programs(2) - 1)
    def _():
        y = acc_ref[...] + bias_ref[...]
        if act == "relu":
            y = jnp.maximum(y, 0.0)
        elif act == "gelu":
            y = _gelu(y)
        o_ref[...] = y.astype(o_ref.dtype)


def matmul_bias_act(a, b, bias, act="none", out_dtype=jnp.float32):
    """(M,K) @ (K,N) + bias (+ act); bf16 operands, f32 accumulation, tiled Pallas kernel."""
    M, K = a.shape
    K2, N = b.shape
    assert K == K2
    tm = _round_up(M, 16) if M <= TM_CAP else _pick_tile(M, TM_CAP, 16)
    tn = _pick_tile(N, TN_CAP, 128)
    tk = _pick_tile(K, TK_CAP, 128)
    Mp, Np, Kp = _round_up(M, tm), _round_up(N, tn), _round_up(K, tk)

    a_p = _pad2(a, Mp, Kp, jnp.bfloat16)
    b_p = _pad2(b, Kp, Np, jnp.bfloat16)
    bias_p = _pad2(bias.reshape(1, N), 1, Np, jnp.float32)

    out = pl.pallas_call(
        partial(_mm_kernel, act=act),
        out_shape=jax.ShapeDtypeStruct((Mp, Np), out_dtype),
        grid=(Mp // tm, Np // tn, Kp // tk),
        in_specs=[
            pl.BlockSpec((tm, tk), lambda i, j, k: (i, k)),
            pl.BlockSpec((tk, tn), lambda i, j, k: (k, j)),
            pl.BlockSpec((1, tn), lambda i, j, k: (0, j)),
        ],
        out_specs=pl.BlockSpec((tm, tn), lambda i, j, k: (i, j)),
        scratch_shapes=[pltpu.VMEM((tm, tn), jnp.float32)],
        compiler_params=pltpu.CompilerParams(
            dimension_semantics=("parallel", "parallel", "arbitrary"),
            vmem_limit_bytes=VMEM_LIMIT),
    )(a_p, b_p, bias_p)
    return out[:M, :N] if (Mp != M or Np != N) else out


# ----------------------------- row-tiled LayerNorm (+residual, +gelu) -----------------------------

def _ln_kernel(*refs, eps, act, has_res):
    if has_res:
        x_ref, r_ref, g_ref, b_ref, o_ref = refs
        x = x_ref[...].astype(jnp.float32) + r_ref[...].astype(jnp.float32)
    else:
        x_ref, g_ref, b_ref, o_ref = refs
        x = x_ref[...].astype(jnp.float32)
    mu = jnp.mean(x, axis=-1, keepdims=True)
    var = jnp.mean((x - mu) ** 2, axis=-1, keepdims=True)
    y = (x - mu) * jax.lax.rsqrt(var + eps) * g_ref[...] + b_ref[...]
    if act == "gelu":
        y = _gelu(y)
    o_ref[...] = y.astype(o_ref.dtype)


def layernorm_act(x, gamma, beta, residual=None, act="none", eps=1e-5,
                  out_dtype=jnp.float32):
    """LayerNorm(x [+ residual]) over the last dim, row-tiled, optional fused GELU."""
    R, C = x.shape
    tr = min(_round_up(R, 8), TR_LN_CAP)
    Rp = _round_up(R, tr)

    ins = [_pad2(x, Rp, C, x.dtype)]
    in_specs = [pl.BlockSpec((tr, C), lambda i: (i, 0))]
    if residual is not None:
        ins.append(_pad2(residual, Rp, C, residual.dtype))
        in_specs.append(pl.BlockSpec((tr, C), lambda i: (i, 0)))
    ins += [gamma.reshape(1, C).astype(jnp.float32),
            beta.reshape(1, C).astype(jnp.float32)]
    in_specs += [pl.BlockSpec((1, C), lambda i: (0, 0)),
                 pl.BlockSpec((1, C), lambda i: (0, 0))]

    out = pl.pallas_call(
        partial(_ln_kernel, eps=eps, act=act, has_res=residual is not None),
        out_shape=jax.ShapeDtypeStruct((Rp, C), out_dtype),
        grid=(Rp // tr,),
        in_specs=in_specs,
        out_specs=pl.BlockSpec((tr, C), lambda i: (i, 0)),
        compiler_params=pltpu.CompilerParams(
            dimension_semantics=("parallel",), vmem_limit_bytes=VMEM_LIMIT),
    )(*ins)
    return out[:R] if Rp != R else out


# ---------------- fused feature-encoder block: conv + bias + channel-LN + GELU (row-tiled) ----------------

def _fe_block_kernel(*refs, K, stride, Lt, Cin, eps):
    phase_refs = refs[:stride]
    w_ref, b_ref, g_ref, be_ref, o_ref = refs[stride:]
    phases = [r[...] for r in phase_refs]                     # each (Lt+qmax, Cin) bf16
    cols = []
    for k in range(K):                                        # in-kernel im2col
        q, r = divmod(k, stride)
        cols.append(jax.lax.slice(phases[r], (q, 0), (q + Lt, Cin)))
    patch = cols[0] if K == 1 else jnp.concatenate(cols, axis=-1)   # (Lt, K*Cin) bf16
    y = jnp.dot(patch, w_ref[...], preferred_element_type=jnp.float32) + b_ref[...]
    mu = jnp.mean(y, axis=-1, keepdims=True)                  # LayerNorm over channels
    var = jnp.mean((y - mu) ** 2, axis=-1, keepdims=True)
    y = (y - mu) * jax.lax.rsqrt(var + eps) * g_ref[...] + be_ref[...]
    o_ref[...] = _gelu(y).astype(o_ref.dtype)


def feature_encoder_block(x_cl, w, b, ln_g, ln_b, stride):
    """Conv1d(valid, stride) -> Dropout(id) -> LayerNorm(channel) -> GELU. x_cl: (B, Lin, Cin)."""
    B, Lin, Cin = x_cl.shape
    Cout, _, K = w.shape
    Lout = (Lin - K) // stride + 1
    qmax = (K - 1) // stride

    Lt = min(_round_up(Lout, 8), LT_CONV_CAP)
    n_t = _cdiv(Lout, Lt)
    Lout_pad = n_t * Lt
    rows_in = Lt + qmax

    # stride-phase split + per-tile halo (duplicates only qmax rows per tile in HBM)
    Lphase = Lout_pad + Lt
    Lin_need = Lphase * stride
    if Lin_need > Lin:
        xp = jnp.pad(x_cl, ((0, 0), (0, Lin_need - Lin), (0, 0)))
    else:
        xp = x_cl[:, :Lin_need]
    x4 = xp.reshape(B, Lphase, stride, Cin).astype(jnp.bfloat16)

    phases = []
    for r in range(stride):
        ph = x4[:, :, r, :]
        main = ph[:, :Lout_pad].reshape(B, n_t, Lt, Cin)
        if qmax > 0:
            halo = ph[:, Lt:Lt + Lout_pad].reshape(B, n_t, Lt, Cin)[:, :, :qmax]
            ph = jnp.concatenate([main, halo], axis=2)
        else:
            ph = main
        phases.append(ph)                                     # (B, n_t, rows_in, Cin)

    # wk[k*Cin + c, o] = w[o, c, k]
    wk = jnp.transpose(w, (2, 1, 0)).reshape(K * Cin, Cout).astype(jnp.bfloat16)

    in_specs = [pl.BlockSpec((None, None, rows_in, Cin), lambda bb, tt: (bb, tt, 0, 0))
                for _ in range(stride)]
    in_specs += [
        pl.BlockSpec((K * Cin, Cout), lambda bb, tt: (0, 0)),
        pl.BlockSpec((1, Cout), lambda bb, tt: (0, 0)),
        pl.BlockSpec((1, Cout), lambda bb, tt: (0, 0)),
        pl.BlockSpec((1, Cout), lambda bb, tt: (0, 0)),
    ]
    out = pl.pallas_call(
        partial(_fe_block_kernel, K=K, stride=stride, Lt=Lt, Cin=Cin, eps=1e-5),
        out_shape=jax.ShapeDtypeStruct((B, Lout_pad, Cout), jnp.bfloat16),
        grid=(B, n_t),
        in_specs=in_specs,
        out_specs=pl.BlockSpec((None, Lt, Cout), lambda bb, tt: (bb, tt, 0)),
        compiler_params=pltpu.CompilerParams(
            dimension_semantics=("parallel", "parallel"),
            vmem_limit_bytes=VMEM_LIMIT),
    )(*(phases + [wk,
                  b.reshape(1, Cout).astype(jnp.float32),
                  ln_g.reshape(1, Cout).astype(jnp.float32),
                  ln_b.reshape(1, Cout).astype(jnp.float32)]))
    return out[:, :Lout, :] if Lout_pad != Lout else out      # (B, Lout, Cout) channels-last


# ------------- fused relative positional embedding (grouped conv + LN + GELU, row-tiled) -------------

def _rpe_kernel(x_ref, w_ref, b_ref, g_ref, be_ref, o_ref, *, K, G, Cg, og, Lt, eps):
    x = x_ref[...]                                            # (Lt+K-1, G*Cg) bf16
    w = w_ref[...]                                            # (K, G, Cg, og) bf16
    acc = None
    for k in range(K):                                        # one batched-group matmul per tap
        xs = jax.lax.slice(x, (k, 0), (k + Lt, G * Cg)).reshape(Lt, G, Cg)
        term = jnp.einsum('lgc,gco->lgo', xs, w[k], preferred_element_type=jnp.float32)
        acc = term if acc is None else acc + term
    y = acc.reshape(Lt, G * og) + b_ref[...]
    mu = jnp.mean(y, axis=-1, keepdims=True)
    var = jnp.mean((y - mu) ** 2, axis=-1, keepdims=True)
    y = (y - mu) * jax.lax.rsqrt(var + eps) * g_ref[...] + be_ref[...]
    o_ref[...] = _gelu(y).astype(o_ref.dtype)


def rel_pos_embedding(x_cl, p):
    """Grouped Conv1d(pad=K//2) -> drop last step -> LayerNorm -> GELU, fused. x_cl: (B,L,C)."""
    B, L, C = x_cl.shape
    w, b = p["w"], p["b"]                                     # (C, C//groups, K)
    Cout, Cg, K = w.shape
    G = C // Cg
    og = Cout // G
    pad = K // 2

    Lt = min(_round_up(L, 8), LT_CONV_CAP)
    n_t = _cdiv(L, Lt)
    L_pad = n_t * Lt
    rows_in = Lt + K - 1

    Lneed = L_pad + max(Lt, K)
    xp = jnp.pad(x_cl.astype(jnp.bfloat16), ((0, 0), (pad, Lneed - pad - L), (0, 0)))
    main = xp[:, :L_pad].reshape(B, n_t, Lt, C)
    if K > 1:
        halo = xp[:, Lt:Lt + L_pad].reshape(B, n_t, Lt, C)[:, :, :K - 1]
        xh = jnp.concatenate([main, halo], axis=2)            # (B, n_t, rows_in, C)
    else:
        xh = main

    # wk[k, g, c, o] = w[g*og + o, c, k]
    wk = jnp.transpose(w.reshape(G, og, Cg, K), (3, 0, 2, 1)).astype(jnp.bfloat16)

    out = pl.pallas_call(
        partial(_rpe_kernel, K=K, G=G, Cg=Cg, og=og, Lt=Lt, eps=1e-5),
        out_shape=jax.ShapeDtypeStruct((B, L_pad, Cout), jnp.bfloat16),
        grid=(B, n_t),
        in_specs=[
            pl.BlockSpec((None, None, rows_in, C), lambda bb, tt: (bb, tt, 0, 0)),
            pl.BlockSpec((K, G, Cg, og), lambda bb, tt: (0, 0, 0, 0)),
            pl.BlockSpec((1, Cout), lambda bb, tt: (0, 0)),
            pl.BlockSpec((1, Cout), lambda bb, tt: (0, 0)),
            pl.BlockSpec((1, Cout), lambda bb, tt: (0, 0)),
        ],
        out_specs=pl.BlockSpec((None, Lt, Cout), lambda bb, tt: (bb, tt, 0)),
        compiler_params=pltpu.CompilerParams(
            dimension_semantics=("parallel", "parallel"),
            vmem_limit_bytes=VMEM_LIMIT),
    )(xh, wk,
      b.reshape(1, Cout).astype(jnp.float32),
      p["ln_g"].reshape(1, Cout).astype(jnp.float32),
      p["ln_b"].reshape(1, Cout).astype(jnp.float32))
    return out[:, :L, :] if L_pad != L else out               # (B, L, C) channels-last


# ----------------------------- flash attention (online softmax, kv-tiled) -----------------------------

def _flash_attn_kernel(q_ref, k_ref, v_ref, o_ref, m_sc, l_sc, acc_sc,
                       *, scale, kv_len, tkv, need_mask):
    kvi = pl.program_id(2)

    @pl.when(kvi == 0)
    def _():
        m_sc[...] = jnp.full_like(m_sc, -jnp.inf)
        l_sc[...] = jnp.zeros_like(l_sc)
        acc_sc[...] = jnp.zeros_like(acc_sc)

    # fold the softmax scale into q (L*Dh multiplies instead of L*L)
    q = (q_ref[...].astype(jnp.float32) * scale).astype(jnp.bfloat16)
    s = jnp.einsum('gqd,gkd->gqk', q, k_ref[...], preferred_element_type=jnp.float32)
    if need_mask:
        key_idx = kvi * tkv + jax.lax.broadcasted_iota(jnp.int32, s.shape, 2)
        s = jnp.where(key_idx < kv_len, s, -1e30)

    m_prev = m_sc[...]
    m_new = jnp.maximum(m_prev, jnp.max(s, axis=-1, keepdims=True))
    alpha = jnp.exp(m_prev - m_new)
    p = jnp.exp(s - m_new)
    l_sc[...] = alpha * l_sc[...] + jnp.sum(p, axis=-1, keepdims=True)
    acc_sc[...] = alpha * acc_sc[...] + jnp.einsum(
        'gqk,gkd->gqd', p.astype(jnp.bfloat16), v_ref[...],
        preferred_element_type=jnp.float32)
    m_sc[...] = m_new

    @pl.when(kvi == pl.num_programs(2) - 1)
    def _():
        o_ref[...] = (acc_sc[...] * pl.reciprocal(l_sc[...], approx=True)).astype(o_ref.dtype)


def flash_attention(qh, kh, vh):
    """Softmax(q k^T / sqrt(d)) v over blocks of (batch*heads, q rows, kv rows)."""
    G, L, Dh = qh.shape
    scale = 1.0 / math.sqrt(Dh)
    Lp = _round_up(L, 8)
    gb = min(G, GB_ATTN_CAP)
    Gp = _round_up(G, gb)
    tq = min(Lp, TQ_ATTN_CAP)
    tkv = min(Lp, TKV_ATTN_CAP)

    def prep(t):
        t = t.astype(jnp.bfloat16)
        if (Gp, Lp) != (G, L):
            t = jnp.pad(t, ((0, Gp - G), (0, Lp - L), (0, 0)))
        return t

    q, k, v = prep(qh), prep(kh), prep(vh)
    need_mask = Lp != L

    out = pl.pallas_call(
        partial(_flash_attn_kernel, scale=scale, kv_len=L, tkv=tkv, need_mask=need_mask),
        out_shape=jax.ShapeDtypeStruct((Gp, Lp, Dh), jnp.bfloat16),
        grid=(Gp // gb, Lp // tq, Lp // tkv),
        in_specs=[
            pl.BlockSpec((gb, tq, Dh), lambda g, i, j: (g, i, 0)),
            pl.BlockSpec((gb, tkv, Dh), lambda g, i, j: (g, j, 0)),
            pl.BlockSpec((gb, tkv, Dh), lambda g, i, j: (g, j, 0)),
        ],
        out_specs=pl.BlockSpec((gb, tq, Dh), lambda g, i, j: (g, i, 0)),
        scratch_shapes=[pltpu.VMEM((gb, tq, 1), jnp.float32),
                        pltpu.VMEM((gb, tq, 1), jnp.float32),
                        pltpu.VMEM((gb, tq, Dh), jnp.float32)],
        compiler_params=pltpu.CompilerParams(
            dimension_semantics=("parallel", "parallel", "arbitrary"),
            vmem_limit_bytes=VMEM_LIMIT),
    )(q, k, v)
    return out[:G, :L] if (Gp, Lp) != (G, L) else out


# ----------------------- fused o-proj + residual + LayerNorm (norm1) -----------------------

def _proj_res_ln_kernel(x_ref, r_ref, w_ref, b_ref, g_ref, be_ref, o_ref, *, eps):
    y = jnp.dot(x_ref[...], w_ref[...], preferred_element_type=jnp.float32) + b_ref[...]
    y = y + r_ref[...].astype(jnp.float32)
    mu = jnp.mean(y, axis=-1, keepdims=True)
    var = jnp.mean((y - mu) ** 2, axis=-1, keepdims=True)
    o_ref[...] = ((y - mu) * jax.lax.rsqrt(var + eps) * g_ref[...]
                  + be_ref[...]).astype(o_ref.dtype)


def proj_residual_ln(ctx2d, res2d, w, bias, gamma, beta, out_dtype=jnp.bfloat16, eps=1e-5):
    R, K = ctx2d.shape
    _, N = w.shape
    tr = min(_round_up(R, 16), TR_FUSED_CAP)
    Rp = _round_up(R, tr)
    out = pl.pallas_call(
        partial(_proj_res_ln_kernel, eps=eps),
        out_shape=jax.ShapeDtypeStruct((Rp, N), out_dtype),
        grid=(Rp // tr,),
        in_specs=[
            pl.BlockSpec((tr, K), lambda i: (i, 0)),
            pl.BlockSpec((tr, N), lambda i: (i, 0)),
            # TODO(synk): on v7x consider single-buffering these grid-invariant weight blocks.
            pl.BlockSpec((K, N), lambda i: (0, 0)),
            pl.BlockSpec((1, N), lambda i: (0, 0)),
            pl.BlockSpec((1, N), lambda i: (0, 0)),
            pl.BlockSpec((1, N), lambda i: (0, 0)),
        ],
        out_specs=pl.BlockSpec((tr, N), lambda i: (i, 0)),
        compiler_params=pltpu.CompilerParams(
            dimension_semantics=("parallel",), vmem_limit_bytes=VMEM_LIMIT),
    )(_pad2(ctx2d, Rp, K, jnp.bfloat16), _pad2(res2d, Rp, N, jnp.bfloat16),
      w.astype(jnp.bfloat16), bias.reshape(1, N).astype(jnp.float32),
      gamma.reshape(1, N).astype(jnp.float32), beta.reshape(1, N).astype(jnp.float32))
    return out[:R] if Rp != R else out


# ----------------------------- fused FFN + residual + LayerNorm (norm2) -----------------------------

def _ffn_ln_kernel(x_ref, w1_ref, b1_ref, w2_ref, b2_ref, g_ref, be_ref, o_ref, *, eps):
    x32 = x_ref[...].astype(jnp.float32)
    h = jnp.dot(x_ref[...], w1_ref[...], preferred_element_type=jnp.float32) + b1_ref[...]
    h = jnp.maximum(h, 0.0)                                   # ReLU, hidden stays in VMEM
    y = jnp.dot(h.astype(jnp.bfloat16), w2_ref[...],
                preferred_element_type=jnp.float32) + b2_ref[...]
    y = x32 + y                                               # residual
    mu = jnp.mean(y, axis=-1, keepdims=True)
    var = jnp.mean((y - mu) ** 2, axis=-1, keepdims=True)
    o_ref[...] = ((y - mu) * jax.lax.rsqrt(var + eps) * g_ref[...]
                  + be_ref[...]).astype(o_ref.dtype)


def ffn_residual_ln(x2d, lp, out_dtype=jnp.bfloat16, eps=1e-5):
    R, E = x2d.shape
    dff = lp["w1"].shape[0]
    tr = min(_round_up(R, 16), TR_FUSED_CAP)
    Rp = _round_up(R, tr)
    xp = _pad2(x2d, Rp, E, jnp.bfloat16)
    w1 = lp["w1"].T.astype(jnp.bfloat16)                      # (E, dff)
    w2 = lp["w2"].T.astype(jnp.bfloat16)                      # (dff, E)

    out = pl.pallas_call(
        partial(_ffn_ln_kernel, eps=eps),
        out_shape=jax.ShapeDtypeStruct((Rp, E), out_dtype),
        grid=(Rp // tr,),
        in_specs=[
            pl.BlockSpec((tr, E), lambda i: (i, 0)),
            # TODO(synk): on v7x consider single-buffering these grid-invariant weight blocks.
            pl.BlockSpec((E, dff), lambda i: (0, 0)),
            pl.BlockSpec((1, dff), lambda i: (0, 0)),
            pl.BlockSpec((dff, E), lambda i: (0, 0)),
            pl.BlockSpec((1, E), lambda i: (0, 0)),
            pl.BlockSpec((1, E), lambda i: (0, 0)),
            pl.BlockSpec((1, E), lambda i: (0, 0)),
        ],
        out_specs=pl.BlockSpec((tr, E), lambda i: (i, 0)),
        compiler_params=pltpu.CompilerParams(
            dimension_semantics=("parallel",), vmem_limit_bytes=VMEM_LIMIT),
    )(xp, w1, lp["b1"].reshape(1, dff).astype(jnp.float32), w2,
      lp["b2"].reshape(1, E).astype(jnp.float32),
      lp["norm2_g"].reshape(1, E).astype(jnp.float32),
      lp["norm2_b"].reshape(1, E).astype(jnp.float32))
    return out[:R] if Rp != R else out


# ----------------------------------- transformer glue -----------------------------------

def multihead_attention_ctx(x, lp, num_heads):
    """nn.MultiheadAttention(q=k=v=x) up to (not including) the output projection."""
    L, N, E = x.shape
    Dh = E // num_heads
    x2 = x.reshape(L * N, E)
    qkv = matmul_bias_act(x2, lp["w_qkv"].T, lp["b_qkv"], out_dtype=jnp.bfloat16)
    q, k, v = jnp.split(qkv, 3, axis=-1)

    def to_heads(t):
        t = t.reshape(L, N, num_heads, Dh)
        return jnp.transpose(t, (1, 2, 0, 3)).reshape(N * num_heads, L, Dh)

    ctx = flash_attention(to_heads(q), to_heads(k), to_heads(v))        # (N*H, L, Dh) bf16
    # TODO(synk): the head split/merge transposes could be folded into the attention kernel's
    #             index_maps to save these extra HBM passes.
    ctx = jnp.transpose(ctx.reshape(N, num_heads, L, Dh), (2, 0, 1, 3)).reshape(L * N, E)
    return ctx


def transformer_layer(x, lp, num_heads, out_dtype=jnp.bfloat16):
    # x interpreted as (L, N, E) exactly as nn.MultiheadAttention (batch_first=False)
    L, N, E = x.shape
    x2d = x.reshape(L * N, E)
    ctx = multihead_attention_ctx(x, lp, num_heads)
    x1 = proj_residual_ln(ctx, x2d, lp["w_o"].T, lp["b_o"],
                          lp["norm1_g"], lp["norm1_b"], out_dtype=jnp.bfloat16)
    x3 = ffn_residual_ln(x1, lp, out_dtype=out_dtype)
    return x3.reshape(L, N, E)


# ----------------------------------- model glue -----------------------------------

def feature_encoder(src, params, cfg):
    B, T = src.shape
    x = src[:, :, None]                                        # (B, T, 1) channels-last
    for blk, stride in zip(params["fe_blocks"], cfg["fe_strides"]):
        x = feature_encoder_block(x, blk["w"], blk["b"], blk["ln_g"], blk["ln_b"], stride)
    _, Tp, C = x.shape

    # masking: reproduces the torch slice-assignment loop (mask start ids sampled over the
    # RAW input length T, slices applied on the conv-time axis, modulus is T as in the
    # reference); applied as one fused select instead of a loop of scatters.
    span = cfg["mask_span"]
    tmask = np.zeros((Tp,), dtype=bool)
    for idx in cfg["mask_start_ids"]:
        end = (idx + span) % T
        if end > idx:
            tmask[min(idx, Tp):min(end, Tp)] = True
    tmask_j = jnp.asarray(tmask)
    mv = params["mask_vector"].astype(x.dtype)
    masked_x = jnp.where(tmask_j[None, :, None], mv[None, None, :], x)
    mask = jnp.broadcast_to(tmask_j[None, :, None], x.shape)
    return {"x": x, "masked_x": masked_x, "mask": mask}         # all (B, T', C)


def product_quantizer(x_cl, p, key, n_groups, n_entries, temperature):
    B, T, z_dim = x_cl.shape
    xt = x_cl.reshape(B * T, z_dim)
    logits = matmul_bias_act(xt, p["proj_w"].T, p["proj_b"], out_dtype=jnp.float32)
    codebook_logits = logits.reshape(B, T, n_groups, n_entries)
    # TODO(synk): gumbel sampling / argmax / codevector gather kept as JAX glue (hard=True
    #             forward value == gather of codevectors at argmax(logits + gumbel)).
    lg = logits.reshape(B * T, n_groups, n_entries)
    u = jax.random.uniform(key, lg.shape, jnp.float32, minval=1e-6, maxval=1.0 - 1e-6)
    gumbel = -jnp.log(-jnp.log(u))
    idx = jnp.argmax((lg + gumbel) / temperature, axis=-1)      # (B*T, G)
    v_dim = p["codevectors"].shape[-1]
    cv = p["codevectors"].reshape(n_groups, n_entries, v_dim)
    q = cv[jnp.arange(n_groups)[None, :], idx]                  # (B*T, G, v_dim)
    q = q.reshape(B, T, n_groups * v_dim)
    return {"codebook_logits": codebook_logits, "q": q}


def wav2vec2_forward(src, params, cfg, gumbel_key):
    B, T = src.shape
    fe_out = feature_encoder(src, params, cfg)
    features = fe_out["masked_x"]                               # (B, T', fe_dim)
    unmasked = fe_out["x"]
    mask = fe_out["mask"]

    _, Tp, fe_dim = features.shape
    final_dim = cfg["final_dim"]

    # post_extract_proj (fe_dim != final_dim)
    f2d = matmul_bias_act(features.reshape(B * Tp, fe_dim),
                          params["pep_w"].T, params["pep_b"], out_dtype=jnp.bfloat16)
    features_p = f2d.reshape(B, Tp, final_dim)

    # relative positional embedding conv + LayerNorm(features + pos_emb) (fused residual LN)
    pos = rel_pos_embedding(features_p, params["rpe"])          # (B, Tp, final_dim)
    x = layernorm_act(f2d, params["norm_g"], params["norm_b"],
                      residual=pos.reshape(B * Tp, final_dim),
                      out_dtype=jnp.bfloat16).reshape(B, Tp, final_dim)

    # quantizer on unmasked features
    qres = product_quantizer(unmasked, params["quant"], gumbel_key,
                             cfg["qt_n_groups"], cfg["qt_n_entries"], cfg["temperature"])

    # transformer encoder (input interpreted as (L=B, N=T', E), faithful to the module)
    n_layers = len(params["tfe_layers"])
    for li, lp in enumerate(params["tfe_layers"]):
        out_dtype = jnp.float32 if li == n_layers - 1 else jnp.bfloat16
        x = transformer_layer(x, lp, cfg["tfe_num_heads"], out_dtype=out_dtype)

    return {"x": x,
            "y": qres["q"],
            "mask": mask,
            "codebook_logits": qres["codebook_logits"]}


# ----------------------------- parameter init -----------------------------

def init_params(key, cfg):
    fe_dim, final_dim = cfg["fe_dim"], cfg["final_dim"]
    G, E = cfg["qt_n_groups"], cfg["qt_n_entries"]
    v_dim = final_dim // G
    dff = cfg["tfe_dff"]
    kit = iter(jax.random.split(key, 128))

    def nrm(shape, scale=0.05):
        return scale * jax.random.normal(next(kit), shape, jnp.float32)

    def unif(shape):
        return jax.random.uniform(next(kit), shape, jnp.float32)

    params = {}
    blocks, in_ch = [], 1
    for ksz in cfg["fe_kernel_sizes"]:
        blocks.append({"w": nrm((fe_dim, in_ch, ksz)), "b": nrm((fe_dim,)),
                       "ln_g": jnp.ones((fe_dim,), jnp.float32),
                       "ln_b": jnp.zeros((fe_dim,), jnp.float32)})
        in_ch = fe_dim
    params["fe_blocks"] = blocks
    params["mask_vector"] = unif((fe_dim,))
    params["pep_w"] = nrm((final_dim, fe_dim))
    params["pep_b"] = nrm((final_dim,))
    params["rpe"] = {"w": nrm((final_dim, final_dim // cfg["rpe_groups"], cfg["rpe_kernel_size"])),
                     "b": nrm((final_dim,)),
                     "ln_g": jnp.ones((final_dim,), jnp.float32),
                     "ln_b": jnp.zeros((final_dim,), jnp.float32)}
    params["quant"] = {"proj_w": nrm((G * E, fe_dim)), "proj_b": nrm((G * E,)),
                       "codevectors": unif((1, G * E, v_dim))}
    params["norm_g"] = jnp.ones((final_dim,), jnp.float32)
    params["norm_b"] = jnp.zeros((final_dim,), jnp.float32)
    layers = []
    for _ in range(cfg["tfe_num_layers"]):
        layers.append({"w_qkv": nrm((3 * final_dim, final_dim)), "b_qkv": nrm((3 * final_dim,)),
                       "w_o": nrm((final_dim, final_dim)), "b_o": nrm((final_dim,)),
                       "w1": nrm((dff, final_dim)), "b1": nrm((dff,)),
                       "w2": nrm((final_dim, dff)), "b2": nrm((final_dim,)),
                       "norm1_g": jnp.ones((final_dim,), jnp.float32),
                       "norm1_b": jnp.zeros((final_dim,), jnp.float32),
                       "norm2_g": jnp.ones((final_dim,), jnp.float32),
                       "norm2_b": jnp.zeros((final_dim,), jnp.float32)})
    params["tfe_layers"] = layers
    return params


# ----------------------------- main -----------------------------

if __name__ == "__main__":
    cfg = dict(
        fe_n_blocks=2, fe_dim=16, fe_kernel_sizes=[4, 4], fe_strides=[2, 2],
        p=0.1, with_mask=True, mask_span=3, drop_prob=0.0,
        rpe_kernel_size=4, rpe_groups=4,
        qt_n_groups=2, qt_n_entries=8, final_dim=32, temperature=1.0,
        tfe_dff=64, tfe_num_heads=4, tfe_num_layers=2,
    )
    B, T = 2, 64
    root = jax.random.PRNGKey(0)
    k_data, k_param, k_mask, k_gumbel = jax.random.split(root, 4)
    src = jax.random.normal(k_data, (B, T), jnp.float32)
    params = init_params(k_param, cfg)

    # mask start ids: reproduces torch.multinomial(arange(T).float(), int(p*T)) semantics
    num_samples = int(cfg["p"] * T)
    weights = np.arange(T, dtype=np.float64)
    start_ids = np.asarray(jax.random.choice(
        k_mask, T, shape=(num_samples,), replace=False, p=weights / weights.sum()))
    cfg["mask_start_ids"] = [int(i) for i in start_ids]

    out = wav2vec2_forward(src, params, cfg, k_gumbel)
    out = jax.tree_util.tree_map(lambda a: jax.block_until_ready(a), out)

    Tp = 14  # (64-4)//2+1 = 31 ; (31-4)//2+1 = 14
    assert out["x"].shape == (B, Tp, cfg["final_dim"])
    assert out["y"].shape == (B, Tp, cfg["final_dim"])
    assert out["mask"].shape == (B, Tp, cfg["fe_dim"])
    assert out["codebook_logits"].shape == (B, Tp, cfg["qt_n_groups"], cfg["qt_n_entries"])
    assert all(bool(jnp.all(jnp.isfinite(out[k].astype(jnp.float32)))) for k in ("x", "y"))
    print("KERNEL_OK")
</pallas_src>

<mosaic_0001>
module attributes {stable_mosaic.version = 11 : i64} {
  func.func @_fe_block_kernel(%arg0: i32, %arg1: i32, %arg2: memref<1x1x33x1xbf16, #tpu.memory_space<vmem>>, %arg3: memref<1x1x33x1xbf16, #tpu.memory_space<vmem>>, %arg4: memref<4x16xbf16, #tpu.memory_space<vmem>>, %arg5: memref<1x16xf32, #tpu.memory_space<vmem>>, %arg6: memref<1x16xf32, #tpu.memory_space<vmem>>, %arg7: memref<1x16xf32, #tpu.memory_space<vmem>>, %arg8: memref<1x32x16xbf16, #tpu.memory_space<vmem>>) attributes {dimension_semantics = [#tpu.dimension_semantics<parallel>, #tpu.dimension_semantics<parallel>], iteration_bounds = array<i64: 2, 1>, scalar_prefetch = 0 : i64, scratch_operands = 0 : i64, tpu.core_type = #tpu.core_type<tc>, window_params = [{transform_indices = @transform_0, window_bounds = array<i64: 1, 1, 33, 1>}, {transform_indices = @transform_1, window_bounds = array<i64: 1, 1, 33, 1>}, {pipeline_mode = #tpu.pipeline_mode<synchronous>, transform_indices = @transform_2, window_bounds = array<i64: 4, 16>}, {pipeline_mode = #tpu.pipeline_mode<synchronous>, transform_indices = @transform_3, window_bounds = array<i64: 1, 16>}, {pipeline_mode = #tpu.pipeline_mode<synchronous>, transform_indices = @transform_4, window_bounds = array<i64: 1, 16>}, {pipeline_mode = #tpu.pipeline_mode<synchronous>, transform_indices = @transform_5, window_bounds = array<i64: 1, 16>}, {transform_indices = @transform_6, window_bounds = array<i64: 1, 32, 16>}]} {
    %c0 = arith.constant 0 : index
    %c0_0 = arith.constant 0 : index
    %c0_1 = arith.constant 0 : index
    %c0_2 = arith.constant 0 : index
    %0 = vector.load %arg2[%c0, %c0_0, %c0_1, %c0_2] : memref<1x1x33x1xbf16, #tpu.memory_space<vmem>>, vector<1x1x33x1xbf16>
    %1 = vector.shape_cast %0 : vector<1x1x33x1xbf16> to vector<33x1xbf16>
    %c0_3 = arith.constant 0 : index
    %c0_4 = arith.constant 0 : index
    %c0_5 = arith.constant 0 : index
    %c0_6 = arith.constant 0 : index
    %2 = vector.load %arg3[%c0_3, %c0_4, %c0_5, %c0_6] : memref<1x1x33x1xbf16, #tpu.memory_space<vmem>>, vector<1x1x33x1xbf16>
    %3 = vector.shape_cast %2 : vector<1x1x33x1xbf16> to vector<33x1xbf16>
    %4 = vector.extract_strided_slice %1 {offsets = [0, 0], sizes = [32, 1], strides = [1, 1]} : vector<33x1xbf16> to vector<32x1xbf16>
    %5 = vector.extract_strided_slice %3 {offsets = [0, 0], sizes = [32, 1], strides = [1, 1]} : vector<33x1xbf16> to vector<32x1xbf16>
    %6 = vector.extract_strided_slice %1 {offsets = [1, 0], sizes = [32, 1], strides = [1, 1]} : vector<33x1xbf16> to vector<32x1xbf16>
    %7 = vector.extract_strided_slice %3 {offsets = [1, 0], sizes = [32, 1], strides = [1, 1]} : vector<33x1xbf16> to vector<32x1xbf16>
    %8 = tpu.concatenate %4, %5, %6, %7 in 1 : vector<32x1xbf16>, vector<32x1xbf16>, vector<32x1xbf16>, vector<32x1xbf16> -> vector<32x4xbf16>
    %c0_7 = arith.constant 0 : index
    %c0_8 = arith.constant 0 : index
    %9 = vector.load %arg4[%c0_7, %c0_8] : memref<4x16xbf16, #tpu.memory_space<vmem>>, vector<4x16xbf16>
    %cst = arith.constant dense<0.000000e+00> : vector<32x16xf32>
    %10 = tpu.matmul %8, %9, %cst {dimension_numbers = #tpu.dot_dimension_numbers<[1], [0], [0], [1], [0, 0, 1, 1], [], []>} : vector<32x4xbf16>, vector<4x16xbf16>, vector<32x16xf32> -> vector<32x16xf32>
    %c0_9 = arith.constant 0 : index
    %c0_10 = arith.constant 0 : index
    %11 = vector.load %arg5[%c0_9, %c0_10] : memref<1x16xf32, #tpu.memory_space<vmem>>, vector<1x16xf32>
    %12 = vector.broadcast %11 : vector<1x16xf32> to vector<32x16xf32>
    %13 = arith.addf %10, %12 : vector<32x16xf32>
    %cst_11 = arith.constant dense<0.000000e+00> : vector<32xf32>
    %14 = vector.multi_reduction <add>, %13, %cst_11 [1] : vector<32x16xf32> to vector<32xf32>
    %15 = vector.shape_cast %14 : vector<32xf32> to vector<32x1xf32>
    %cst_12 = arith.constant 1.600000e+01 : f32
    %16 = vector.broadcast %cst_12 : f32 to vector<32x1xf32>
    %17 = arith.divf %15, %16 : vector<32x1xf32>
    %18 = vector.broadcast %17 : vector<32x1xf32> to vector<32x16xf32>
    %19 = arith.subf %13, %18 : vector<32x16xf32>
    %20 = arith.mulf %19, %19 : vector<32x16xf32>
    %cst_13 = arith.constant dense<0.000000e+00> : vector<32xf32>
    %21 = vector.multi_reduction <add>, %20, %cst_13 [1] : vector<32x16xf32> to vector<32xf32>
    %22 = vector.shape_cast %21 : vector<32xf32> to vector<32x1xf32>
    %cst_14 = arith.constant 1.600000e+01 : f32
    %23 = vector.broadcast %cst_14 : f32 to vector<32x1xf32>
    %24 = arith.divf %22, %23 : vector<32x1xf32>
    %25 = vector.broadcast %17 : vector<32x1xf32> to vector<32x16xf32>
    %26 = arith.subf %13, %25 : vector<32x16xf32>
    %cst_15 = arith.constant 9.99999974E-6 : f32
    %27 = vector.broadcast %cst_15 : f32 to vector<32x1xf32>
    %28 = arith.addf %24, %27 : vector<32x1xf32>
    %29 = math.rsqrt %28 : vector<32x1xf32>
    %30 = vector.broadcast %29 : vector<32x1xf32> to vector<32x16xf32>
    %31 = arith.mulf %26, %30 : vector<32x16xf32>
    %c0_16 = arith.constant 0 : index
    %c0_17 = arith.constant 0 : index
    %32 = vector.load %arg6[%c0_16, %c0_17] : memref<1x16xf32, #tpu.memory_space<vmem>>, vector<1x16xf32>
    %33 = vector.broadcast %32 : vector<1x16xf32> to vector<32x16xf32>
    %34 = arith.mulf %31, %33 : vector<32x16xf32>
    %c0_18 = arith.constant 0 : index
    %c0_19 = arith.constant 0 : index
    %35 = vector.load %arg7[%c0_18, %c0_19] : memref<1x16xf32, #tpu.memory_space<vmem>>, vector<1x16xf32>
    %36 = vector.broadcast %35 : vector<1x16xf32> to vector<32x16xf32>
    %37 = arith.addf %34, %36 : vector<32x16xf32>
    %cst_20 = arith.constant 5.000000e-01 : f32
    %38 = vector.broadcast %cst_20 : f32 to vector<32x16xf32>
    %39 = arith.mulf %38, %37 : vector<32x16xf32>
    %cst_21 = arith.constant 4.471500e-02 : f32
    %40 = vector.broadcast %cst_21 : f32 to vector<32x16xf32>
    %41 = arith.mulf %40, %37 : vector<32x16xf32>
    %42 = arith.mulf %41, %37 : vector<32x16xf32>
    %43 = arith.mulf %42, %37 : vector<32x16xf32>
    %44 = arith.addf %37, %43 : vector<32x16xf32>
    %cst_22 = arith.constant 0.797884583 : f32
    %45 = vector.broadcast %cst_22 : f32 to vector<32x16xf32>
    %46 = arith.mulf %45, %44 : vector<32x16xf32>
    %47 = math.tanh %46 : vector<32x16xf32>
    %cst_23 = arith.constant 1.000000e+00 : f32
    %48 = vector.broadcast %cst_23 : f32 to vector<32x16xf32>
    %49 = arith.addf %48, %47 : vector<32x16xf32>
    %50 = arith.mulf %39, %49 : vector<32x16xf32>
    %51 = arith.truncf %50 : vector<32x16xf32> to vector<32x16xbf16>
    %c0_24 = arith.constant 0 : index
    %c0_25 = arith.constant 0 : index
    %c0_26 = arith.constant 0 : index
    %52 = vector.load %arg8[%c0_24, %c0_25, %c0_26] : memref<1x32x16xbf16, #tpu.memory_space<vmem>>, vector<1x32x16xbf16>
    %53 = vector.shape_cast %52 : vector<1x32x16xbf16> to vector<32x16xbf16>
    %54 = vector.shape_cast %51 : vector<32x16xbf16> to vector<1x32x16xbf16>
    tpu.vector_store %arg8[%c0_24, %c0_25, %c0_26], %54 {strides = array<i32>} : memref<1x32x16xbf16, #tpu.memory_space<vmem>>, vector<1x32x16xbf16>,
    return
  }
  func.func @transform_0(%arg0: i32, %arg1: i32) -> (i32, i32, i32, i32) {
    %c0_i32 = arith.constant 0 : i32
    %c0_i32_0 = arith.constant 0 : i32
    %c0_i32_1 = arith.constant 0 : i32
    return %arg0, %arg1, %c0_i32, %c0_i32_0 : i32, i32, i32, i32
  }
  func.func @transform_1(%arg0: i32, %arg1: i32) -> (i32, i32, i32, i32) {
    %c0_i32 = arith.constant 0 : i32
    %c0_i32_0 = arith.constant 0 : i32
    %c0_i32_1 = arith.constant 0 : i32
    return %arg0, %arg1, %c0_i32, %c0_i32_0 : i32, i32, i32, i32
  }
  func.func @transform_2(%arg0: i32, %arg1: i32) -> (i32, i32) {
    %c0_i32 = arith.constant 0 : i32
    %c0_i32_0 = arith.constant 0 : i32
    %c0_i32_1 = arith.constant 0 : i32
    return %c0_i32, %c0_i32_0 : i32, i32
  }
  func.func @transform_3(%arg0: i32, %arg1: i32) -> (i32, i32) {
    %c0_i32 = arith.constant 0 : i32
    %c0_i32_0 = arith.constant 0 : i32
    %c0_i32_1 = arith.constant 0 : i32
    return %c0_i32, %c0_i32_0 : i32, i32
  }
  func.func @transform_4(%arg0: i32, %arg1: i32) -> (i32, i32) {
    %c0_i32 = arith.constant 0 : i32
    %c0_i32_0 = arith.constant 0 : i32
    %c0_i32_1 = arith.constant 0 : i32
    return %c0_i32, %c0_i32_0 : i32, i32
  }
  func.func @transform_5(%arg0: i32, %arg1: i32) -> (i32, i32) {
    %c0_i32 = arith.constant 0 : i32
    %c0_i32_0 = arith.constant 0 : i32
    %c0_i32_1 = arith.constant 0 : i32
    return %c0_i32, %c0_i32_0 : i32, i32
  }
  func.func @transform_6(%arg0: i32, %arg1: i32) -> (i32, i32, i32) {
    %c0_i32 = arith.constant 0 : i32
    %c0_i32_0 = arith.constant 0 : i32
    return %arg0, %arg1, %c0_i32 : i32, i32, i32
  }
}

</mosaic_0001>

<llo_original>
// kernel: tpu_custom_call.1
$region0: #{tpu_custom_call.1}
  #allocation0 [shape = 'u32[]', space=smem, size = 0x4, offset = 0x4, fixed_abs, tag = 'smem constant byte address 0x4 - core index']
  #allocation1 [shape = 'u32[144,128]{1,0:T(1,128)}', space=vmem, size = 0x12000, scoped, tag = 'internal scratch']
  %s0 = inlined_call_operand.vmem [shape: bf16[2,1,33,1], index: 0, kind: input, shape index: {}]
  %s1 = inlined_call_operand.vmem [shape: bf16[2,1,33,1], index: 1, kind: input, shape index: {}]
  %s2 = inlined_call_operand.vmem [shape: bf16[4,16], index: 2, kind: input, shape index: {}]
  %s3 = inlined_call_operand.vmem [shape: f32[1,16], index: 3, kind: input, shape index: {}]
  %s4 = inlined_call_operand.vmem [shape: f32[1,16], index: 4, kind: input, shape index: {}]
  %s5 = inlined_call_operand.vmem [shape: f32[1,16], index: 5, kind: input, shape index: {}]
  %s6 = inlined_call_operand.vmem [shape: bf16[2,32,16], index: 6, kind: output, shape index: {}]
  %s7 = sld [smem:[#allocation0]]
  $region57: #{tpu_custom_call.1} parent=0
    _
  %s9 = ssub.s32 1, %s7
  %s10 = scalar_select 0, %s9, %s7
  loop: start=0, step=1, limit=4
  $region2: #{tpu_custom_call.1} parent=0 // loop_pre_header
    _
  $region3: #{tpu_custom_call.1} parent=0 // loop_header
    %s12 = sphi 0, %s16
    %p13 = scmp.ge.s32.totalorder %s12, 4
    %s19 = sphi 0, %s31
    %s20 = sphi 0, %s27
    %s21 = sphi 0, %s19
    %s22 = sphi 0, %s20
    %s23 = sphi 0, %s21
    %s24 = sphi 0, %s22
    %s36 = sphi 0, %s38
    %s39 = sphi 0, %s36
    %s40 = sphi 0, %s39
    %s56 = sphi 0, %s40
    %s64 = sphi 0, %s66
    %s67 = sphi 0, %s64
    %s68 = sphi 0, %s67
    %s84 = sphi 0, %s68
    %s88 = sphi 0, %s88
    %s90 = sphi 0, %s88
    %s91 = sphi 0, %s90
    %s105 = sphi 0, %s91
    %s109 = sphi 0, %s109
    %s111 = sphi 0, %s109
    %s112 = sphi 0, %s111
    %s126 = sphi 0, %s112
    %s130 = sphi 0, %s130
    %s132 = sphi 0, %s130
    %s133 = sphi 0, %s132
    %s147 = sphi 0, %s133
    %s151 = sphi 0, %s151
    %s153 = sphi 0, %s151
    %s154 = sphi 0, %s153
    %s168 = sphi 0, %s154
    %s176 = sphi 0, %s178
    %s179 = sphi 0, %s176
    %s180 = sphi 0, %s179
    %s196 = sphi 0, %s180
  $region4: #{tpu_custom_call.1} parent=0 // loop_header_branch
    %15 = sbr.rel (%p13) target = $region8
  $region5: #{tpu_custom_call.1} parent=0 // loop_body
    %s17 = ssub.s32 %s12, 1
    %s18 = ssub.s32 %s12, 2
    %s25 = sadd.s32 1, %s20
    %p26 = scmp.ge.s32.totalorder %s25, 1
    %s27 = scalar_select %p26, 0, %s25
    %s28 = sadd.s32 1, %s19
    %s29 = scalar_select %p26, %s28, %s19
    %p30 = scmp.ge.s32.totalorder %s29, 2
    %s31 = scalar_select %p30, 0, %s29
    %s32 = ssub.s32 %s19, %s31
    %s33 = ssub.s32 %s20, %s27
    %s34 = sor.u32 %s32, %s33
    %p35 = scmp.eq.s32.totalorder %s34, 0
    %s37 = sadd.s32 %s36, 1
    %s38 = scalar_select %p35, %s36, %s37
    %p41 = pneg %p35
    %p42 = scmp.eq.s32.totalorder %s12, 1
    %p43 = por %p41, %p42
    %p44 = scmp.ne.s32.totalorder %s36, %s39
    %p45 = scmp.eq.s32.totalorder %s12, 0
    %p46 = por %p44, %p45
    %p47 = scmp.ne.s32.totalorder %s36, %s39
    %p48 = scmp.eq.s32.totalorder %s17, 1
    %p49 = por %p47, %p48
    %p50 = scmp.ne.s32.totalorder %s39, %s40
    %p51 = scmp.eq.s32.totalorder %s17, 0
    %p52 = por %p50, %p51
    %p53 = scmp.ne.s32.totalorder %s39, %s40
    %p54 = scmp.eq.s32.totalorder %s18, 1
    %p55 = por %p53, %p54
    %p57 = scmp.ne.s32.totalorder %s40, %s56
    %p58 = scmp.eq.s32.totalorder %s18, 0
    %p59 = por %p57, %p58
    %s60 = ssub.s32 %s19, %s31
    %s61 = ssub.s32 %s20, %s27
    %s62 = sor.u32 %s60, %s61
    %p63 = scmp.eq.s32.totalorder %s62, 0
    %s65 = sadd.s32 %s64, 1
    %s66 = scalar_select %p63, %s64, %s65
    %p69 = pneg %p63
    %p70 = scmp.eq.s32.totalorder %s12, 1
    %p71 = por %p69, %p70
    %p72 = scmp.ne.s32.totalorder %s64, %s67
    %p73 = scmp.eq.s32.totalorder %s12, 0
    %p74 = por %p72, %p73
    %p75 = scmp.ne.s32.totalorder %s64, %s67
    %p76 = scmp.eq.s32.totalorder %s17, 1
    %p77 = por %p75, %p76
    %p78 = scmp.ne.s32.totalorder %s67, %s68
    %p79 = scmp.eq.s32.totalorder %s17, 0
    %p80 = por %p78, %p79
    %p81 = scmp.ne.s32.totalorder %s67, %s68
    %p82 = scmp.eq.s32.totalorder %s18, 1
    %p83 = por %p81, %p82
    %p85 = scmp.ne.s32.totalorder %s68, %s84
    %p86 = scmp.eq.s32.totalorder %s18, 0
    %p87 = por %p85, %p86
    %s89 = sadd.s32 %s88, 1
    %p92 = scmp.eq.s32.totalorder %s12, 1
    %p93 = scmp.ne.s32.totalorder %s88, %s90
    %p94 = scmp.eq.s32.totalorder %s12, 0
    %p95 = por %p93, %p94
    %p96 = scmp.ne.s32.totalorder %s88, %s90
    %p97 = scmp.eq.s32.totalorder %s17, 1
    %p98 = por %p96, %p97
    %p99 = scmp.ne.s32.totalorder %s90, %s91
    %p100 = scmp.eq.s32.totalorder %s17, 0
    %p101 = por %p99, %p100
    %p102 = scmp.ne.s32.totalorder %s90, %s91
    %p103 = scmp.eq.s32.totalorder %s18, 1
    %p104 = por %p102, %p103
    %p106 = scmp.ne.s32.totalorder %s91, %s105
    %p107 = scmp.eq.s32.totalorder %s18, 0
    %p108 = por %p106, %p107
    %s110 = sadd.s32 %s109, 1
    %p113 = scmp.eq.s32.totalorder %s12, 1
    %p114 = scmp.ne.s32.totalorder %s109, %s111
    %p115 = scmp.eq.s32.totalorder %s12, 0
    %p116 = por %p114, %p115
    %p117 = scmp.ne.s32.totalorder %s109, %s111
    %p118 = scmp.eq.s32.totalorder %s17, 1
    %p119 = por %p117, %p118
    %p120 = scmp.ne.s32.totalorder %s111, %s112
    %p121 = scmp.eq.s32.totalorder %s17, 0
    %p122 = por %p120, %p121
    %p123 = scmp.ne.s32.totalorder %s111, %s112
    %p124 = scmp.eq.s32.totalorder %s18, 1
    %p125 = por %p123, %p124
    %p127 = scmp.ne.s32.totalorder %s112, %s126
    %p128 = scmp.eq.s32.totalorder %s18, 0
    %p129 = por %p127, %p128
    %s131 = sadd.s32 %s130, 1
    %p134 = scmp.eq.s32.totalorder %s12, 1
    %p135 = scmp.ne.s32.totalorder %s130, %s132
    %p136 = scmp.eq.s32.totalorder %s12, 0
    %p137 = por %p135, %p136
    %p138 = scmp.ne.s32.totalorder %s130, %s132
    %p139 = scmp.eq.s32.totalorder %s17, 1
    %p140 = por %p138, %p139
    %p141 = scmp.ne.s32.totalorder %s132, %s133
    %p142 = scmp.eq.s32.totalorder %s17, 0
    %p143 = por %p141, %p142
    %p144 = scmp.ne.s32.totalorder %s132, %s133
    %p145 = scmp.eq.s32.totalorder %s18, 1
    %p146 = por %p144, %p145
    %p148 = scmp.ne.s32.totalorder %s133, %s147
    %p149 = scmp.eq.s32.totalorder %s18, 0
    %p150 = por %p148, %p149
    %s152 = sadd.s32 %s151, 1
    %p155 = scmp.eq.s32.totalorder %s12, 1
    %p156 = scmp.ne.s32.totalorder %s151, %s153
    %p157 = scmp.eq.s32.totalorder %s12, 0
    %p158 = por %p156, %p157
    %p159 = scmp.ne.s32.totalorder %s151, %s153
    %p160 = scmp.eq.s32.totalorder %s17, 1
    %p161 = por %p159, %p160
    %p162 = scmp.ne.s32.totalorder %s153, %s154
    %p163 = scmp.eq.s32.totalorder %s17, 0
    %p164 = por %p162, %p163
    %p165 = scmp.ne.s32.totalorder %s153, %s154
    %p166 = scmp.eq.s32.totalorder %s18, 1
    %p167 = por %p165, %p166
    %p169 = scmp.ne.s32.totalorder %s154, %s168
    %p170 = scmp.eq.s32.totalorder %s18, 0
    %p171 = por %p169, %p170
    %s172 = ssub.s32 %s19, %s31
    %s173 = ssub.s32 %s20, %s27
    %s174 = sor.u32 %s172, %s173
    %p175 = scmp.eq.s32.totalorder %s174, 0
    %s177 = sadd.s32 %s176, 1
    %s178 = scalar_select %p175, %s176, %s177
    %p181 = pneg %p175
    %p182 = scmp.eq.s32.totalorder %s12, 1
    %p183 = por %p181, %p182
    %p184 = scmp.ne.s32.totalorder %s176, %s179
    %p185 = scmp.eq.s32.totalorder %s12, 0
    %p186 = por %p184, %p185
    %p187 = scmp.ne.s32.totalorder %s176, %s179
    %p188 = scmp.eq.s32.totalorder %s17, 1
    %p189 = por %p187, %p188
    %p190 = scmp.ne.s32.totalorder %s179, %s180
    %p191 = scmp.eq.s32.totalorder %s17, 0
    %p192 = por %p190, %p191
    %p193 = scmp.ne.s32.totalorder %s179, %s180
    %p194 = scmp.eq.s32.totalorder %s18, 1
    %p195 = por %p193, %p194
    %p197 = scmp.ne.s32.totalorder %s180, %s196
    %p198 = scmp.eq.s32.totalorder %s18, 0
    %p199 = por %p197, %p198
    %p200 = scmp.le.s32.totalorder 1, %s12
    %p201 = scmp.lt.s32.totalorder %s12, 3
    %p202 = pnand %p200, %p201
    %p203 = pneg %p202
    // Predicated region
    $region9: #{tpu_custom_call.1} parent=5 // pred_check
      _
    $region10: #{tpu_custom_call.1} parent=5 // pred_check_branch
      %205 = sbr.rel (%p202) target = $region12
    $region11: #{tpu_custom_call.1} parent=5 // pred_region
      %s206 = ssub.s32 %s12, 1
      // Predicated region
      $region13: #{tpu_custom_call.1} parent=11 // pred_check
        %p207 = pneg %p101
      $region14: #{tpu_custom_call.1} parent=11 // pred_check_branch
        %209 = sbr.rel (%p207) target = $region16
      $region15: #{tpu_custom_call.1} parent=11 // pred_region
        _
      $region16: #{tpu_custom_call.1} parent=11 // pred_fallthru
        _
      // Predicated region
      $region17: #{tpu_custom_call.1} parent=11 // pred_check
        %p210 = pneg %p122
      $region18: #{tpu_custom_call.1} parent=11 // pred_check_branch
        %212 = sbr.rel (%p210) target = $region20
      $region19: #{tpu_custom_call.1} parent=11 // pred_region
        _
      $region20: #{tpu_custom_call.1} parent=11 // pred_fallthru
        _
      // Predicated region
      $region21: #{tpu_custom_call.1} parent=11 // pred_check
        %p213 = pneg %p143
      $region22: #{tpu_custom_call.1} parent=11 // pred_check_branch
        %215 = sbr.rel (%p213) target = $region24
      $region23: #{tpu_custom_call.1} parent=11 // pred_region
        _
      $region24: #{tpu_custom_call.1} parent=11 // pred_fallthru
        _
      // Predicated region
      $region25: #{tpu_custom_call.1} parent=11 // pred_check
        %p216 = pneg %p164
      $region26: #{tpu_custom_call.1} parent=11 // pred_check_branch
        %218 = sbr.rel (%p216) target = $region28
      $region27: #{tpu_custom_call.1} parent=11 // pred_region
        _
      $region28: #{tpu_custom_call.1} parent=11 // pred_fallthru
        _
    $region12: #{tpu_custom_call.1} parent=5 // pred_fallthru
      _
    %p219 = scmp.lt.s32.totalorder %s12, 2
    // Predicated region
    $region29: #{tpu_custom_call.1} parent=5 // pred_check
      %p220 = pneg %p219
    $region30: #{tpu_custom_call.1} parent=5 // pred_check_branch
      %222 = sbr.rel (%p220) target = $region32
    $region31: #{tpu_custom_call.1} parent=5 // pred_region
      // Predicated region
      $region33: #{tpu_custom_call.1} parent=31 // pred_check
        %p223 = pneg %p46
      $region34: #{tpu_custom_call.1} parent=31 // pred_check_branch
        %225 = sbr.rel (%p223) target = $region36
      $region35: #{tpu_custom_call.1} parent=31 // pred_region
        %p226 = scmp.lt.s32.totalorder %s19, 1
        %s227 = scalar_select %p226, %s19, 1
        %p228 = scmp.lt.s32.totalorder %s20, 0
        %s229 = scalar_select %p228, %s20, 0
        %s230 = smul.addr %s229, 5
        %s231 = smul.addr %s227, 5
        %s232 = sadd.s32 %s230, %s231
        %s233 = smul.addr %s232, 4
        %s234 = scalar_lea.vmem %s0, %s233
      $region36: #{tpu_custom_call.1} parent=31 // pred_fallthru
        _
      // Predicated region
      $region37: #{tpu_custom_call.1} parent=31 // pred_check
        %p235 = pneg %p74
      $region38: #{tpu_custom_call.1} parent=31 // pred_check_branch
        %237 = sbr.rel (%p235) target = $region40
      $region39: #{tpu_custom_call.1} parent=31 // pred_region
        %p238 = scmp.lt.s32.totalorder %s19, 1
        %s239 = scalar_select %p238, %s19, 1
        %p240 = scmp.lt.s32.totalorder %s20, 0
        %s241 = scalar_select %p240, %s20, 0
        %s242 = smul.addr %s241, 5
        %s243 = smul.addr %s239, 5
        %s244 = sadd.s32 %s242, %s243
        %s245 = smul.addr %s244, 4
        %s246 = scalar_lea.vmem %s1, %s245
      $region40: #{tpu_custom_call.1} parent=31 // pred_fallthru
        _
    $region32: #{tpu_custom_call.1} parent=5 // pred_fallthru
      _
    %p247 = scmp.le.s32.totalorder 1, %s12
    %p248 = scmp.lt.s32.totalorder %s12, 3
    %p249 = pnand %p247, %p248
    %p250 = pneg %p249
    // Predicated region
    $region41: #{tpu_custom_call.1} parent=5 // pred_check
      _
    $region42: #{tpu_custom_call.1} parent=5 // pred_check_branch
      %252 = sbr.rel (%p249) target = $region44
    $region43: #{tpu_custom_call.1} parent=5 // pred_region
      %s253 = ssub.s32 %s12, 1
      %p254 = scmp.lt.s32.totalorder %s21, 1
      %s255 = scalar_select %p254, %s21, 1
      %p256 = scmp.lt.s32.totalorder %s22, 0
      %s257 = scalar_select %p256, %s22, 0
      %s258 = smul.addr %s257, 5
      %s259 = smul.addr %s255, 5
      %s260 = sadd.s32 %s258, %s259
      %s261 = smul.addr %s260, 4
      %s262 = scalar_lea.vmem %s0, %s261
      %p263 = pneg %p52
      %p264 = pneg %p49
      %p265 = scmp.lt.s32.totalorder %s21, 1
      %s266 = scalar_select %p265, %s21, 1
      %p267 = scmp.lt.s32.totalorder %s22, 0
      %s268 = scalar_select %p267, %s22, 0
      %s269 = smul.addr %s268, 5
      %s270 = smul.addr %s266, 5
      %s271 = sadd.s32 %s269, %s270
      %s272 = smul.addr %s271, 4
      %s273 = scalar_lea.vmem %s1, %s272
      %p274 = pneg %p80
      %p275 = pneg %p77
      %p276 = pneg %p101
      %p277 = pneg %p98
      %p278 = pneg %p122
      %p279 = pneg %p119
      %p280 = pneg %p143
      %p281 = pneg %p140
      %p282 = pneg %p164
      %p283 = pneg %p161
      %p284 = pneg %p192
      %p285 = pneg %p189
      %s286 = smul.u32 4, %s22
      %p287 = scmp.lt.s32.totalorder %s21, 1
      %s288 = scalar_select %p287, %s21, 1
      %p289 = scmp.lt.s32.totalorder %s286, 3
      %s290 = scalar_select %p289, %s286, 3
      %s291 = smul.addr %s288, 4
      %s292 = sadd.s32 %s290, %s291
      %s293 = smul.addr %s292, 4
      %s294 = scalar_lea.vmem %s6, %s293
      %p295 = scmp.lt.s32.totalorder %s21, 1
      %s296 = scalar_select %p295, %s21, 1
      %p297 = scmp.lt.s32.totalorder %s22, 0
      %s298 = scalar_select %p297, %s22, 0
      %s299 = smul.addr %s298, 5
      %s300 = smul.addr %s296, 5
      %s301 = sadd.s32 %s299, %s300
      %s302 = smul.addr %s301, 4
      %s303 = scalar_lea.vmem %s0, %s302
      %p304 = scmp.lt.s32.totalorder %s21, 1
      %s305 = scalar_select %p304, %s21, 1
      %p306 = scmp.lt.s32.totalorder %s22, 0
      %s307 = scalar_select %p306, %s22, 0
      %s308 = smul.addr %s307, 5
      %s309 = smul.addr %s305, 5
      %s310 = sadd.s32 %s308, %s309
      %s311 = smul.addr %s310, 4
      %s312 = scalar_lea.vmem %s1, %s311
      %s313 = smul.u32 4, %s22
      %p314 = scmp.lt.s32.totalorder %s21, 1
      %s315 = scalar_select %p314, %s21, 1
      %p316 = scmp.lt.s32.totalorder %s313, 3
      %s317 = scalar_select %p316, %s313, 3
      %s318 = smul.addr %s315, 4
      %s319 = sadd.s32 %s317, %s318
      %s320 = smul.addr %s319, 4
      %s321 = scalar_lea.vmem %s6, %s320
      %s322 = smul.u32 4, %s22
      %v324 = vld [vmem:[%s303] sm:$0xf]
      %v325 = vld [vmem:[%s303 + $0x4] sm:$0xf]
      %v326 = vld [vmem:[%s303 + $0x8] sm:$0xf]
      %v327 = vld [vmem:[%s303 + $0xc] sm:$0xf]
      %v328 = vld [vmem:[%s303 + $0x10] sm:$0x1]
      %v329 = vld [vmem:[%s312] sm:$0xf]
      %v330 = vld [vmem:[%s312 + $0x4] sm:$0xf]
      %v331 = vld [vmem:[%s312 + $0x8] sm:$0xf]
      %v332 = vld [vmem:[%s312 + $0xc] sm:$0xf]
      %v333 = vld [vmem:[%s312 + $0x10] sm:$0x1]
      %v338 = vunpack.c.l.b16 %v324
      %v339 = vunpack.c.l.b16 %v325
      %v340 = vunpack.c.l.b16 %v326
      %v341 = vunpack.c.l.b16 %v327
      %v342 = vpack.c.b16 %v339, %v338
      %v343 = vpack.c.b16 %v341, %v340
      %v348 = vunpack.c.l.b16 %v329
      %v349 = vunpack.c.l.b16 %v330
      %v350 = vunpack.c.l.b16 %v331
      %v351 = vunpack.c.l.b16 %v332
      %v352 = vpack.c.b16 %v349, %v348
      %v353 = vpack.c.b16 %v351, %v350
      %354 = vrot.lane.b32.xlu0 %v352, 1
      %v355 = vpop.permute.xlu0 %354
      %356 = vrot.lane.b32.xlu0 %v353, 1
      %v357 = vpop.permute.xlu0 %356
      %v359 = vunpack.c.l.b16 %v328
      %v360 = vpack.c.b16 %v359, %v359
      %vm361 = vsmask.f32 7424
      %v363 = vshrl.u32 %v342, 16
      %v365 = vshll.u32 %v342, 16
      %v367 = vrot.slane %v365, 1
      %v368 = vor.u32 %v363, %v367
      %v370 = vshll.u32 %v343, 16
      %v372 = vrot.slane %v370, 1
      %v373 = vsel %vm361, %v368, %v372
      %v374 = vshrl.u32 %v343, 16
      %v376 = vor.u32 %v374, %v372
      %v378 = vshll.u32 %v360, 16
      %v380 = vrot.slane %v378, 1
      %v381 = vsel %vm361, %v376, %v380
      %382 = vrot.lane.b32.xlu0 %v373, 2
      %v383 = vpop.permute.xlu0 %382
      %384 = vrot.lane.b32.xlu0 %v381, 2
      %v385 = vpop.permute.xlu0 %384
      %v387 = vunpack.c.l.b16 %v333
      %v388 = vpack.c.b16 %v387, %v387
      %v390 = vshrl.u32 %v352, 16
      %v392 = vshll.u32 %v352, 16
      %v394 = vrot.slane %v392, 1
      %v395 = vor.u32 %v390, %v394
      %v397 = vshll.u32 %v353, 16
      %v399 = vrot.slane %v397, 1
      %v400 = vsel %vm361, %v395, %v399
      %v401 = vshrl.u32 %v353, 16
      %v403 = vor.u32 %v401, %v399
      %v405 = vshll.u32 %v388, 16
      %v407 = vrot.slane %v405, 1
      %v408 = vsel %vm361, %v403, %v407
      %409 = vrot.lane.b32.xlu0 %v400, 3
      %v410 = vpop.permute.xlu0 %409
      %411 = vrot.lane.b32.xlu0 %v408, 3
      %v412 = vpop.permute.xlu0 %411
      %vm413 = vcmask 7168
      %v415 = vsel %vm413, %v342, %v355
      %v417 = vsel %vm413, %v343, %v357
      %vm418 = vcmask 15360
      %v420 = vsel %vm418, %v415, %v383
      %v422 = vsel %vm418, %v417, %v385
      %vm423 = vcmask 23552
      %v425 = vsel %vm423, %v420, %v410
      %v427 = vsel %vm423, %v422, %v412
      %v428 = vld [vmem:[%s2] sm:$0x3]
      %v429 = vld [vmem:[%s3] sm:$0x1]
      %v431 = vlaneseq
      %v432 = vshrl.u32 %v431, 7
      %v433 = vsub.s32 0, %v432
      %v434 = vrot.slane %v429, %v433
      %vm436 = vcmask 31744
      %v437 = vsel %vm436, %v425, 0
      %v439 = vsel %vm436, %v427, 0
      %vm441 = vcmask 1041408
      %v443 = vsel %vm441, %v428, 0
      %445 = vmatprep.subr.bf16.mxu0 0
      %446 = vmatpush1.bf16.msra.mxu0 %v443
      %447 = vmatprep.subr.bf16.mxu0 0
      %448 = vmatpush1.bf16.msra.mxu0 0
      %449 = vmatprep.subr.bf16.mxu0 0
      %450 = vmatpush1.bf16.msra.mxu0 0
      %451 = vmatprep.subr.bf16.mxu0 0
      %452 = vmatpush1.bf16.msra.mxu0 0
      %453 = vmatprep.subr.bf16.mxu0 0
      %454 = vmatpush1.bf16.msra.mxu0 0
      %455 = vmatprep.subr.bf16.mxu0 0
      %456 = vmatpush1.bf16.msra.mxu0 0
      %457 = vmatprep.subr.bf16.mxu0 0
      %458 = vmatpush1.bf16.msra.mxu0 0
      %459 = vmatprep.subr.bf16.mxu0 0
      %460 = vmatpush1.bf16.msra.mxu0 0
      %461 = vmatprep.subr.bf16.mxu0 0
      %462 = vmatpush1.bf16.msra.mxu0 0
      %463 = vmatprep.subr.bf16.mxu0 0
      %464 = vmatpush1.bf16.msra.mxu0 0
      %465 = vmatprep.subr.bf16.mxu0 0
      %466 = vmatpush1.bf16.msra.mxu0 0
      %467 = vmatprep.subr.bf16.mxu0 0
      %468 = vmatpush1.bf16.msra.mxu0 0
      %469 = vmatprep.subr.bf16.mxu0 0
      %470 = vmatpush1.bf16.msra.mxu0 0
      %471 = vmatprep.subr.bf16.mxu0 0
      %472 = vmatpush1.bf16.msra.mxu0 0
      %473 = vmatprep.subr.bf16.mxu0 0
      %474 = vmatpush1.bf16.msra.mxu0 0
      %475 = vmatprep.subr.bf16.mxu0 0
      %476 = vmatpush1.bf16.msra.mxu0 0
      %477 = vmatprep.mubr.bf16.mxu0 0
      %478 = vmatmul.mubr.bf16.gmra.mrb[0].mxu0 %v437
      %v479 = vpop.f32.mrb[0].mxu0
      %v480 = vadd.f32 %v434, %v479
      %v481 = vpop.f32.mrb[0].mxu0
      %v482 = vpop.f32.mrb[0].mxu0
      %v483 = vadd.f32 %v434, %v482
      %v484 = vpop.f32.mrb[0].mxu0
      %485 = vmatprep.mubr.bf16.mxu0 0
      %486 = vmatmul.mubr.bf16.gmra.mrb[0].mxu0 %v439
      %v487 = vpop.f32.mrb[0].mxu0
      %v488 = vadd.f32 %v434, %v487
      %v489 = vpop.f32.mrb[0].mxu0
      %v490 = vpop.f32.mrb[0].mxu0
      %v491 = vadd.f32 %v434, %v490
      %v492 = vpop.f32.mrb[0].mxu0
      %493 = vdwg.mxu0
      %vm494 = vcmask 130048
      %v495 = vsel %vm494, %v480, 0.0
      %496 = vadd.xlane.f32.xlu0 %v495
      %v497 = vpop.xlane.xlu0 %496
      %v498 = vsel %vm494, %v483, 0.0
      %499 = vadd.xlane.f32.xlu0 %v498
      %v500 = vpop.xlane.xlu0 %499
      %v501 = vsel %vm494, %v488, 0.0
      %502 = vadd.xlane.f32.xlu0 %v501
      %v503 = vpop.xlane.xlu0 %502
      %v504 = vsel %vm494, %v491, 0.0
      %505 = vadd.xlane.f32.xlu0 %v504
      %v506 = vpop.xlane.xlu0 %505
      %v507 = vrcp.pop 16.0
      %v508 = vmul.f32 %v497, %v507
      %v509 = vmul.f32 %v500, %v507
      %v510 = vmul.f32 %v503, %v507
      %v511 = vmul.f32 %v506, %v507
      %v512 = vsub.f32 %v480, %v508
      %v513 = vsub.f32 %v483, %v509
      %v514 = vsub.f32 %v488, %v510
      %v515 = vsub.f32 %v491, %v511
      %v516 = vmul.f32 %v512, %v512
      %v517 = vmul.f32 %v513, %v513
      %v518 = vmul.f32 %v514, %v514
      %v519 = vmul.f32 %v515, %v515
      %v520 = vsel %vm494, %v516, 0.0
      %521 = vadd.xlane.f32.xlu0 %v520
      %v522 = vpop.xlane.xlu0 %521
      %v523 = vsel %vm494, %v517, 0.0
      %524 = vadd.xlane.f32.xlu0 %v523
      %v525 = vpop.xlane.xlu0 %524
      %v526 = vsel %vm494, %v518, 0.0
      %527 = vadd.xlane.f32.xlu0 %v526
      %v528 = vpop.xlane.xlu0 %527
      %v529 = vsel %vm494, %v519, 0.0
      %530 = vadd.xlane.f32.xlu0 %v529
      %v531 = vpop.xlane.xlu0 %530
      %v532 = vmul.f32 %v522, %v507
      %v533 = vmul.f32 %v525, %v507
      %v534 = vmul.f32 %v528, %v507
      %v535 = vmul.f32 %v531, %v507
      %v536 = vadd.f32 %v532, 1e-05
      %v537 = vadd.f32 %v533, 1e-05
      %v538 = vadd.f32 %v534, 1e-05
      %v539 = vadd.f32 %v535, 1e-05
      %v540 = vrsqrt.pop %v536
      %v541 = vrsqrt.pop %v537
      %v542 = vrsqrt.pop %v538
      %v543 = vrsqrt.pop %v539
      %v544 = vmul.f32 %v512, %v540
      %v545 = vmul.f32 %v513, %v541
      %v546 = vmul.f32 %v514, %v542
      %v547 = vmul.f32 %v515, %v543
      %v548 = vld [vmem:[%s4] sm:$0x1]
      %v550 = vlaneseq
      %v551 = vshrl.u32 %v550, 7
      %v552 = vsub.s32 0, %v551
      %v553 = vrot.slane %v548, %v552
      %v555 = vmul.f32 %v544, %v553
      %v556 = vmul.f32 %v545, %v553
      %v557 = vmul.f32 %v546, %v553
      %v558 = vmul.f32 %v547, %v553
      %v559 = vld [vmem:[%s5] sm:$0x1]
      %v561 = vlaneseq
      %v562 = vshrl.u32 %v561, 7
      %v563 = vsub.s32 0, %v562
      %v564 = vrot.slane %v559, %v563
      %v566 = vadd.f32 %v555, %v564
      %v567 = vadd.f32 %v556, %v564
      %v568 = vadd.f32 %v557, %v564
      %v569 = vadd.f32 %v558, %v564
      %v570 = vmul.f32 %v566, 0.5
      %v571 = vmul.f32 %v567, 0.5
      %v572 = vmul.f32 %v568, 0.5
      %v573 = vmul.f32 %v569, 0.5
      %v574 = vmul.f32 %v566, 0.044715
      %v575 = vmul.f32 %v567, 0.044715
      %v576 = vmul.f32 %v568, 0.044715
      %v577 = vmul.f32 %v569, 0.044715
      %v578 = vmul.f32 %v574, %v566
      %v579 = vmul.f32 %v575, %v567
      %v580 = vmul.f32 %v576, %v568
      %v581 = vmul.f32 %v577, %v569
      %v582 = vmul.f32 %v578, %v566
      %v583 = vmul.f32 %v579, %v567
      %v584 = vmul.f32 %v580, %v568
      %v585 = vmul.f32 %v581, %v569
      %v586 = vadd.f32 %v566, %v582
      %v587 = vadd.f32 %v567, %v583
      %v588 = vadd.f32 %v568, %v584
      %v589 = vadd.f32 %v569, %v585
      %v590 = vmul.f32 %v586, 0.7978846
      %v591 = vmul.f32 %v587, 0.7978846
      %v592 = vmul.f32 %v588, 0.7978846
      %v593 = vmul.f32 %v589, 0.7978846
      %v594 = vtanh.pop %v590
      %v595 = vtanh.pop %v591
      %v596 = vtanh.pop %v592
      %v597 = vtanh.pop %v593
      %v598 = vadd.f32 %v594, 1.0
      %v599 = vadd.f32 %v595, 1.0
      %v600 = vadd.f32 %v596, 1.0
      %v601 = vadd.f32 %v597, 1.0
      %v602 = vmul.f32 %v570, %v598
      %v603 = vmul.f32 %v571, %v599
      %v604 = vmul.f32 %v572, %v600
      %v605 = vmul.f32 %v573, %v601
      %v606 = vpack.c.bf16 %v603, %v602
      %v607 = vpack.c.bf16 %v605, %v604
      %v610 = vunpack.c.l.b16 %v606
      %v611 = vunpack.c.h.b16 %v606
      %v612 = vunpack.c.l.b16 %v607
      %v613 = vunpack.c.h.b16 %v607
      %v614 = vpack.c.b16 %v610, %v610
      %v615 = vpack.c.b16 %v611, %v611
      %v616 = vpack.c.b16 %v612, %v612
      %v617 = vpack.c.b16 %v613, %v613
      %vm622 = vcmask 125952
      %623 = vst.msk [vmem:[%s321] sm:$0xf] %vm622, %v614
      %624 = vst.msk [vmem:[%s321 + $0x4] sm:$0xf] %vm622, %v615
      %625 = vst.msk [vmem:[%s321 + $0x8] sm:$0xf] %vm622, %v616
      %626 = vst.msk [vmem:[%s321 + $0xc] sm:$0xf] %vm622, %v617
      %s627 = smul.u32 4, %s22
      %p628 = scmp.lt.s32.totalorder %s21, 1
      %s629 = scalar_select %p628, %s21, 1
      %p630 = scmp.lt.s32.totalorder %s627, 3
      %s631 = scalar_select %p630, %s627, 3
      %s632 = smul.addr %s629, 4
      %s633 = sadd.s32 %s631, %s632
      %s634 = smul.addr %s633, 4
      %s635 = scalar_lea.vmem %s6, %s634
      // Predicated region
      $region45: #{tpu_custom_call.1} parent=43 // pred_check
        %p636 = pneg %p189
      $region46: #{tpu_custom_call.1} parent=43 // pred_check_branch
        %638 = sbr.rel (%p636) target = $region48
      $region47: #{tpu_custom_call.1} parent=43 // pred_region
        %s639 = smul.u32 4, %s22
      $region48: #{tpu_custom_call.1} parent=43 // pred_fallthru
        _
    $region44: #{tpu_custom_call.1} parent=5 // pred_fallthru
      _
    %p640 = scmp.le.s32.totalorder 2, %s12
    // Predicated region
    $region49: #{tpu_custom_call.1} parent=5 // pred_check
      %p641 = pneg %p640
    $region50: #{tpu_custom_call.1} parent=5 // pred_check_branch
      %643 = sbr.rel (%p641) target = $region52
    $region51: #{tpu_custom_call.1} parent=5 // pred_region
      %s644 = ssub.s32 %s12, 2
      // Predicated region
      $region53: #{tpu_custom_call.1} parent=51 // pred_check
        %p645 = pneg %p195
      $region54: #{tpu_custom_call.1} parent=51 // pred_check_branch
        %647 = sbr.rel (%p645) target = $region56
      $region55: #{tpu_custom_call.1} parent=51 // pred_region
        %s648 = smul.u32 4, %s24
        %p649 = scmp.lt.s32.totalorder %s23, 1
        %s650 = scalar_select %p649, %s23, 1
        %p651 = scmp.lt.s32.totalorder %s648, 3
        %s652 = scalar_select %p651, %s648, 3
        %s653 = smul.addr %s650, 4
        %s654 = sadd.s32 %s652, %s653
        %s655 = smul.addr %s654, 4
        %s656 = scalar_lea.vmem %s6, %s655
      $region56: #{tpu_custom_call.1} parent=51 // pred_fallthru
        _
    $region52: #{tpu_custom_call.1} parent=5 // pred_fallthru
      _
  $region6: #{tpu_custom_call.1} parent=0 // loop_footer
    %s16 = sadd.s32 1, %s12
  $region7: #{tpu_custom_call.1} parent=0 // loop_footer_branch
    %11 = sbr.rel target = $region3
  $region8: #{tpu_custom_call.1} parent=0 // loop_exit
    _

</llo_original>
